<compile_context>
chip_gen: v7x
topology: tpu7x:2x2x1
jax: 0.10.0
libtpu: 0.0.40
codegen_flags: <defaults>
</compile_context>

<pallas_src>
import functools

import jax
import jax.numpy as jnp
from jax import lax
from jax.experimental import pallas as pl
from jax.experimental.pallas import tpu as pltpu

_REG_WEIGHT = 0.001


def _ce_partial_kernel(pred_ref, tgt_ref, out_ref, *, total_rows, block_rows):
    """Per-tile partial sum of cross-entropy.

    pred_ref: (TB, C) logits tile in native dtype (VMEM)
    tgt_ref:  (TB, 1) int32 class-index tile (VMEM)
    out_ref:  (1, 8, 128) f32 fully (8,128)-aligned partial-sum slab (VMEM)
    """
    i = pl.program_id(0)

    pred = pred_ref[...].astype(jnp.float32)                 # cast per-tile in VMEM
    tgt = tgt_ref[...]                                        # (TB, 1) int32
    tb, c = pred.shape

    # Numerically stable logsumexp per row.
    m = jnp.max(pred, axis=-1, keepdims=True)                 # (TB, 1)
    lse = m + jnp.log(jnp.sum(jnp.exp(pred - m), axis=-1, keepdims=True))

    # Target-logit "gather" via select (no scalar gathers on TPU). jnp.where
    # avoids the one-hot astype + multiply of the previous version.
    col = lax.broadcasted_iota(jnp.int32, (tb, c), 1)
    picked = jnp.sum(jnp.where(col == tgt, pred, 0.0), axis=-1, keepdims=True)

    per_sample = lse - picked                                 # (TB, 1)

    # Tail-row mask for the last (partial) tile. Invariant: keep this AFTER
    # the per-row compute and BEFORE the tile sum. Padded rows may hold
    # garbage, but the math above stays finite (exp(x - max) <= 1) and
    # jnp.where lowers to a select, which does not propagate NaN from the
    # unselected branch.
    row = lax.broadcasted_iota(jnp.int32, (tb, 1), 0) + i * block_rows
    per_sample = jnp.where(row < total_rows, per_sample, 0.0)

    partial = jnp.sum(per_sample)
    # Full-vreg, unmasked store; the wrapper reads [i, 0, 0].
    out_ref[...] = jnp.full((1, 8, 128), partial, dtype=jnp.float32)


def _round_up(x, m):
    return ((x + m - 1) // m) * m


def _choose_block_rows(b, c, itemsize):
    """Bytes-targeted batch tile: ~2 MiB of lane-padded pred bytes per tile."""
    lane_c = _round_up(max(c, 1), 128)
    target_bytes = 2 * 1024 * 1024
    tb = max(8, ((target_bytes // (lane_c * itemsize)) // 8) * 8)
    if b <= tb:
        # Small/medium batch: a single full-extent tile (always layout-legal),
        # unless B is large enough that splitting across v7x's two TensorCores
        # pays for a second grid step.
        if b >= 4096:
            return _round_up(-(-b // 2), 8)
        return b
    # Large batch: an even number (>=2) of ~equal, ~target-sized tiles so both
    # v7x TensorCores get identical work (neutral on single-TC v5e/v6e).
    nt = -(-b // tb)
    nt = nt + (nt % 2)
    return max(8, _round_up(-(-b // nt), 8))


def pointnet_loss(pred, target, reg_loss):
    """pred: (B, C) float (any dtype), target: (B,) int, reg_loss: scalar."""
    b, c = pred.shape
    itemsize = jnp.dtype(pred.dtype).itemsize
    tb = _choose_block_rows(b, c, itemsize)
    num_tiles = pl.cdiv(b, tb)

    tgt_2d = target.astype(jnp.int32).reshape(b, 1)

    kernel = functools.partial(_ce_partial_kernel, total_rows=b, block_rows=tb)

    # VMEM budget: double-buffered pred + target tiles plus f32 temporaries,
    # with headroom. Explicit limit so v5e's 16 MiB scoped default doesn't
    # force smaller tiles; clamped well below v7x's 64 MiB physical VMEM.
    lane_c = _round_up(max(c, 1), 128)
    pred_tile = tb * lane_c * itemsize
    tgt_tile = tb * 128 * 4
    f32_tile = tb * lane_c * 4
    vmem_need = 2 * pred_tile + 2 * tgt_tile + 4 * f32_tile + (2 << 20)
    vmem_limit = int(min(48 << 20, max(32 << 20, vmem_need)))

    partials = pl.pallas_call(
        kernel,
        out_shape=jax.ShapeDtypeStruct((num_tiles, 8, 128), jnp.float32),
        grid=(num_tiles,),
        in_specs=[
            pl.BlockSpec((tb, c), lambda i: (i, 0)),   # pred tile, native dtype
            pl.BlockSpec((tb, 1), lambda i: (i, 0)),   # target tile, int32
        ],
        out_specs=pl.BlockSpec((1, 8, 128), lambda i: (i, 0, 0)),
        compiler_params=pltpu.CompilerParams(
            dimension_semantics=("parallel",),          # independent per-tile partials
            vmem_limit_bytes=vmem_limit,
        ),
        cost_estimate=pl.CostEstimate(
            flops=6 * b * c,
            transcendentals=b * (c + 1),
            bytes_accessed=b * c * itemsize + b * 4 + num_tiles * 8 * 128 * 4,
        ),
    )(pred, tgt_2d)

    # Tiny epilogue in plain JAX: sum per-tile partials, mean, add reg term.
    mean_ce = jnp.sum(partials[:, 0, 0]) / jnp.float32(b)
    return mean_ce + jnp.float32(_REG_WEIGHT) * jnp.asarray(reg_loss, jnp.float32)


def _reference_loss(pred, target, reg_loss):
    # Plain-JAX reference mirroring torch.nn.CrossEntropyLoss (mean reduction).
    logp = jax.nn.log_softmax(pred.astype(jnp.float32), axis=-1)
    nll = -jnp.take_along_axis(logp, target.astype(jnp.int32)[:, None], axis=-1)[:, 0]
    return jnp.mean(nll) + 0.001 * jnp.asarray(reg_loss, jnp.float32)


if __name__ == "__main__":
    key = jax.random.PRNGKey(0)
    k_pred, k_tgt, k_reg = jax.random.split(key, 3)

    B, C = 8, 16  # small shapes: batch of 8 samples, 16 classes
    pred = jax.random.normal(k_pred, (B, C), dtype=jnp.float32)
    target = jax.random.randint(k_tgt, (B,), 0, C, dtype=jnp.int32)
    reg_loss = jax.random.normal(k_reg, (), dtype=jnp.float32) ** 2

    out = jax.block_until_ready(pointnet_loss(pred, target, reg_loss))

    ref = _reference_loss(pred, target, reg_loss)
    assert jnp.allclose(out, ref, rtol=1e-5, atol=1e-5), (out, ref)

    print("KERNEL_OK")
</pallas_src>

<mosaic_0001>
module attributes {stable_mosaic.version = 11 : i64} {
  func.func @_ce_partial_kernel(%arg0: i32, %arg1: memref<8x16xf32, #tpu.memory_space<vmem>>, %arg2: memref<8x1xi32, #tpu.memory_space<vmem>>, %arg3: memref<1x8x128xf32, #tpu.memory_space<vmem>>) attributes {dimension_semantics = [#tpu.dimension_semantics<parallel>], iteration_bounds = array<i64: 1>, scalar_prefetch = 0 : i64, scratch_operands = 0 : i64, tpu.core_type = #tpu.core_type<tc>, window_params = [{transform_indices = @transform_0, window_bounds = array<i64: 8, 16>}, {transform_indices = @transform_1, window_bounds = array<i64: 8, 1>}, {transform_indices = @transform_2, window_bounds = array<i64: 1, 8, 128>}]} {
    %c0 = arith.constant 0 : index
    %c0_0 = arith.constant 0 : index
    %0 = vector.load %arg1[%c0, %c0_0] : memref<8x16xf32, #tpu.memory_space<vmem>>, vector<8x16xf32>
    %c0_1 = arith.constant 0 : index
    %c0_2 = arith.constant 0 : index
    %1 = vector.load %arg2[%c0_1, %c0_2] : memref<8x1xi32, #tpu.memory_space<vmem>>, vector<8x1xi32>
    %cst = arith.constant dense<0xFF800000> : vector<8xf32>
    %2 = vector.multi_reduction <maximumf>, %0, %cst [1] : vector<8x16xf32> to vector<8xf32>
    %3 = vector.shape_cast %2 : vector<8xf32> to vector<8x1xf32>
    %4 = vector.broadcast %3 : vector<8x1xf32> to vector<8x16xf32>
    %5 = arith.subf %0, %4 : vector<8x16xf32>
    %6 = math.exp %5 : vector<8x16xf32>
    %cst_3 = arith.constant dense<0.000000e+00> : vector<8xf32>
    %7 = vector.multi_reduction <add>, %6, %cst_3 [1] : vector<8x16xf32> to vector<8xf32>
    %8 = vector.shape_cast %7 : vector<8xf32> to vector<8x1xf32>
    %9 = math.log %8 : vector<8x1xf32>
    %10 = arith.addf %3, %9 : vector<8x1xf32>
    %11 = tpu.iota {dimensions = array<i32: 1>} : vector<8x16xi32>
    %12 = vector.broadcast %1 : vector<8x1xi32> to vector<8x16xi32>
    %13 = arith.cmpi eq, %11, %12 : vector<8x16xi32>
    %cst_4 = arith.constant 0.000000e+00 : f32
    %14 = vector.broadcast %cst_4 : f32 to vector<8x16xf32>
    %15 = arith.select %13, %0, %14 : vector<8x16xi1>, vector<8x16xf32>
    %cst_5 = arith.constant dense<0.000000e+00> : vector<8xf32>
    %16 = vector.multi_reduction <add>, %15, %cst_5 [1] : vector<8x16xf32> to vector<8xf32>
    %17 = vector.shape_cast %16 : vector<8xf32> to vector<8x1xf32>
    %18 = arith.subf %10, %17 : vector<8x1xf32>
    %19 = tpu.iota {dimensions = array<i32: 0>} : vector<8x1xi32>
    %c8_i32 = arith.constant 8 : i32
    %20 = arith.muli %arg0, %c8_i32 : i32
    %21 = vector.broadcast %20 : i32 to vector<8x1xi32>
    %22 = arith.addi %19, %21 : vector<8x1xi32>
    %c8_i32_6 = arith.constant 8 : i32
    %23 = vector.broadcast %c8_i32_6 : i32 to vector<8x1xi32>
    %24 = arith.cmpi slt, %22, %23 : vector<8x1xi32>
    %cst_7 = arith.constant 0.000000e+00 : f32
    %25 = vector.broadcast %cst_7 : f32 to vector<8x1xf32>
    %26 = arith.select %24, %18, %25 : vector<8x1xi1>, vector<8x1xf32>
    %27 = vector.shape_cast %26 : vector<8x1xf32> to vector<1x8x1xf32>
    %cst_8 = arith.constant dense<0.000000e+00> : vector<1xf32>
    %28 = vector.multi_reduction <add>, %27, %cst_8 [1, 2] : vector<1x8x1xf32> to vector<1xf32>
    %29 = vector.shape_cast %28 : vector<1xf32> to vector<1x1x1xf32>
    %30 = vector.extract %29[0, 0, 0] : f32 from vector<1x1x1xf32>
    %31 = vector.broadcast %30 : f32 to vector<1x8x128xf32>
    %c0_9 = arith.constant 0 : index
    %c0_10 = arith.constant 0 : index
    %c0_11 = arith.constant 0 : index
    %32 = vector.load %arg3[%c0_9, %c0_10, %c0_11] : memref<1x8x128xf32, #tpu.memory_space<vmem>>, vector<1x8x128xf32>
    tpu.vector_store %arg3[%c0_9, %c0_10, %c0_11], %31 {strides = array<i32>} : memref<1x8x128xf32, #tpu.memory_space<vmem>>, vector<1x8x128xf32>,
    return
  }
  func.func @transform_0(%arg0: i32) -> (i32, i32) {
    %c0_i32 = arith.constant 0 : i32
    %c0_i32_0 = arith.constant 0 : i32
    return %arg0, %c0_i32 : i32, i32
  }
  func.func @transform_1(%arg0: i32) -> (i32, i32) {
    %c0_i32 = arith.constant 0 : i32
    %c0_i32_0 = arith.constant 0 : i32
    return %arg0, %c0_i32 : i32, i32
  }
  func.func @transform_2(%arg0: i32) -> (i32, i32, i32) {
    %c0_i32 = arith.constant 0 : i32
    %c0_i32_0 = arith.constant 0 : i32
    %c0_i32_1 = arith.constant 0 : i32
    return %arg0, %c0_i32, %c0_i32_0 : i32, i32, i32
  }
}

</mosaic_0001>

<llo_original>
// kernel: tpu_custom_call.1
$region0: #{tpu_custom_call.1}
  #allocation0 [shape = 'u32[]', space=smem, size = 0x4, offset = 0x4, fixed_abs, tag = 'smem constant byte address 0x4 - core index']
  #allocation1 [shape = 'u32[144,128]{1,0:T(1,128)}', space=vmem, size = 0x12000, scoped, tag = 'internal scratch']
  %s0 = inlined_call_operand.vmem [shape: f32[8,16], index: 0, kind: input, shape index: {}]
  %s1 = inlined_call_operand.vmem [shape: s32[8,1], index: 1, kind: input, shape index: {}]
  %s2 = inlined_call_operand.hbm [shape: f32[1,8,128], index: 2, kind: output, shape index: {}]
  %s3 = sld [smem:[#allocation0]]
  $region18: #{tpu_custom_call.1} parent=0
    _
  %s5 = ssub.s32 1, %s3
  %s6 = scalar_select 0, %s5, %s3
  $region1: #{tpu_custom_call.1} parent=0
    #allocation2 [shape = 'u8[4096]{0}', space=vmem, size = 0x1000, scoped, tag = 'output window, operand 0, single buffered']
    #allocation3 [shape = 's32[1]{0}', space=sflag, size = 0x4, scoped, tag = 'scoped memory for tpu_custom_call.1']
    %7 = vsyncpa [#allocation3], 0
    // Predicated region
    $region2: #{tpu_custom_call.1} parent=1 // pred_check
      _
    $region3: #{tpu_custom_call.1} parent=1 // pred_check_branch
      %9 = sbr.rel (0) target = $region5
    $region4: #{tpu_custom_call.1} parent=1 // pred_region
      _
    $region5: #{tpu_custom_call.1} parent=1 // pred_fallthru
      _
    // Predicated region
    $region6: #{tpu_custom_call.1} parent=1 // pred_check
      _
    $region7: #{tpu_custom_call.1} parent=1 // pred_check_branch
      %11 = sbr.rel (0) target = $region9
    $region8: #{tpu_custom_call.1} parent=1 // pred_region
      _
    $region9: #{tpu_custom_call.1} parent=1 // pred_fallthru
      _
    %v12 = vld [vmem:[%s0] sm:$0xff]
    %v13 = vld [vmem:[%s1] sm:$0xff]
    %vm14 = vcmask 130048
    %v15 = vsel %vm14, %v12, -inf
    %16 = vmax.xlane.f32.xlu0 %v15
    %v17 = vpop.xlane.xlu0 %16
    %v18 = vsub.f32 %v12, %v17
    %v19 = vmul.f32 %v18, 1.442695
    %v20 = vpow.pop %v19
    %v21 = vsel %vm14, %v20, 0.0
    %22 = vadd.xlane.f32.xlu0 %v21
    %v23 = vpop.xlane.xlu0 %22
    %v24 = vlog2.pop %v23
    %v25 = vmul.f32 %v24, 0.6931472
    %v26 = vadd.f32 %v17, %v25
    %v27 = vlaneseq
    %v28 = vand.u32 %v27, 127
    %29 = vset.pattern.permute.xlu0 0
    %30 = vperm.xlu0 %29, %v13
    %v31 = vpop.permute.xlu0 %30
    %vm32 = vcmp.eq.s32.totalorder %v28, %v31
    %v33 = vsel %vm32, %v12, 0.0
    %v34 = vsel %vm14, %v33, 0.0
    %35 = vadd.xlane.f32.xlu0 %v34
    %v36 = vpop.xlane.xlu0 %35
    %v37 = vsub.f32 %v26, %v36
    %v38 = vlaneseq
    %v39 = vshrl.u32 %v38, 7
    %s40 = smul.u32 0, 8
    %v41 = vstv %s40
    %v42 = vadd.s32 %v39, %v41
    %vm43 = vcmp.lt.s32.totalorder %v42, 8
    %v44 = vsel %vm43, %v37, 0.0
    %vm45 = vcmask 7168
    %v46 = vsel %vm45, %v44, 0.0
    %47 = vadd.xlane.f32.xlu0 %v46
    %v48 = vpop.xlane.xlu0 %47
    %v49 = vrot.slane %v48, 4
    %v50 = vadd.f32 %v48, %v49
    %v51 = vrot.slane %v50, 2
    %v52 = vadd.f32 %v50, %v51
    %v53 = vrot.slane %v52, 1
    %v54 = vadd.f32 %v52, %v53
    %s55 = vtos %v54
    %v56 = vstv %s55
    %57 = vst [vmem:[#allocation2] sm:$0xff] %v56
    // Predicated region
    $region10: #{tpu_custom_call.1} parent=1 // pred_check
      _
    $region11: #{tpu_custom_call.1} parent=1 // pred_check_branch
      %59 = sbr.rel (0) target = $region13
    $region12: #{tpu_custom_call.1} parent=1 // pred_region
      %s61 = ssub.s32 128, 128
      %62 = vsyncadd [#allocation3], %s61
      %s64 = sshll.u32 [#allocation2], 4
      %s65 = int_to_ptr.vmem [resolvable:$true] %s64
      %67 = dma.vmem_to_hbm [thread:$0]  %s65, 128, %s2, [#allocation3]
    $region13: #{tpu_custom_call.1} parent=1 // pred_fallthru
      _
    // Predicated region
    $region14: #{tpu_custom_call.1} parent=1 // pred_check
      _
    $region15: #{tpu_custom_call.1} parent=1 // pred_check_branch
      %69 = sbr.rel (0) target = $region17
    $region16: #{tpu_custom_call.1} parent=1 // pred_region
      %70 = dma.done [#allocation3], 128
    $region17: #{tpu_custom_call.1} parent=1 // pred_fallthru
      _
    %71 = vsyncpa [#allocation3], 1

</llo_original>
